<compile_context>
chip_gen: v7x
topology: tpu7x:2x2x1
jax: 0.10.0
libtpu: 0.0.40
codegen_flags: <defaults>
</compile_context>

<pallas_src>
import functools

import jax
import jax.numpy as jnp
from jax import lax
from jax.experimental import pallas as pl
from jax.experimental.pallas import tpu as pltpu


_LANES = 128                    # full vreg lane width -> unmasked vld, full VPU occupancy
_MAX_TILE_ROWS = 8192           # 8192 x 128 f32 = 4 MiB per input tile
_MIN_BLOCKS = 4                 # >=2 for v7x dual-TC sharding, >=4 for pipeline overlap
_VMEM_LIMIT_BYTES = 32 * 1024 * 1024


def _round_up(x, m):
    return ((x + m - 1) // m) * m


def _kld_partial_kernel(lv_ref, mu_ref, out_ref, *, tile_rows, valid_rows):
    """Per-block partial sum of (1 + log_var - mean^2 - exp(log_var)).

    exp() runs on the EUP slot and the sublane reduce on VALU/XLU, so the
    kernel stays HBM-bound.  Stores a lane-dense (1, 128) partial row.
    """
    lv = lv_ref[...].astype(jnp.float32)
    mu = mu_ref[...].astype(jnp.float32)
    term = 1.0 + lv - mu * mu - jnp.exp(lv)

    # Static check: only the last block can read past the end of the array
    # when tile_rows does not divide valid_rows.  Out-of-bounds rows hold
    # unspecified data, so zero them (jnp.where selects, so inf/nan there is
    # harmless).  When divisible this branch is compiled out entirely.
    if valid_rows % tile_rows != 0:
        row0 = pl.program_id(0) * tile_rows
        row_ids = row0 + lax.broadcasted_iota(jnp.int32, (tile_rows, 1), 0)
        term = jnp.where(row_ids < valid_rows, term, 0.0)

    out_ref[...] = jnp.sum(term, axis=0, keepdims=True)  # (1, 128) lane-dense partial


def _kl_plain_jnp(flat_lv, flat_mu):
    lv = flat_lv.astype(jnp.float32)
    mu = flat_mu.astype(jnp.float32)
    return -0.5 * jnp.sum(1.0 + lv - mu * mu - jnp.exp(lv))


def kldce_loss(org, rec, log_var, mean, *, min_pallas_elems=1 << 20):
    """Matches KLDCE.forward: returns the scalar KL divergence term.

    `org` and `rec` are accepted for signature parity with the PyTorch module;
    the MSE computed in the reference forward is dead code (loss = KL).
    Set `min_pallas_elems=0` to force the Pallas kernel regardless of size.
    """
    del org, rec  # MSE is computed but discarded in the reference module.

    flat_lv = log_var.reshape(-1)
    flat_mu = mean.reshape(-1)
    n = flat_lv.shape[0]

    # Small-input fast path: launch + layout cost of a standalone pallas_call
    # dominates below ~1M elements; plain XLA fuses the whole reduction.
    if n < min_pallas_elems:
        return _kl_plain_jnp(flat_lv, flat_mu)

    itemsize = jnp.dtype(flat_lv.dtype).itemsize
    sublane = 16 if itemsize <= 2 else 8          # native bf16 tile is (16, 128)
    rows = pl.cdiv(n, _LANES)

    # Lane-dense (rows, 128) view.  Zero-copy reshape when n % 128 == 0;
    # otherwise pad at most 127 elements (exact for the KL term: padded
    # zeros contribute 1 + 0 - 0 - exp(0) == 0).
    rem = n % _LANES
    if rem:
        pad = rows * _LANES - n
        flat_lv = jnp.pad(flat_lv, (0, pad))
        flat_mu = jnp.pad(flat_mu, (0, pad))
    lv2 = flat_lv.reshape(rows, _LANES)
    mu2 = flat_mu.reshape(rows, _LANES)

    # Tile selection: minimal block count for big tiles, but at least
    # _MIN_BLOCKS (when rows allow) so v7x's two TensorCores both work and
    # the pipeline has steps to overlap.  Rounding waste is < one sublane
    # group per block (masked in-kernel, never materialized in HBM).
    min_blocks = min(_MIN_BLOCKS, rows // sublane) if rows >= sublane else 1
    num_blocks = max(pl.cdiv(rows, _MAX_TILE_ROWS), min_blocks)
    tile_rows = _round_up(pl.cdiv(rows, num_blocks), sublane)
    if tile_rows > rows:
        tile_rows = rows                           # tiny input: single full-extent block
    num_blocks = pl.cdiv(rows, tile_rows)

    kernel = functools.partial(
        _kld_partial_kernel, tile_rows=tile_rows, valid_rows=rows)

    n_proc = rows * _LANES
    cost = pl.CostEstimate(
        flops=6 * n_proc,
        transcendentals=n_proc,
        bytes_accessed=2 * n_proc * itemsize + num_blocks * _LANES * 4,
    )

    partials = pl.pallas_call(
        kernel,
        out_shape=jax.ShapeDtypeStruct((num_blocks, _LANES), jnp.float32),
        grid=(num_blocks,),
        in_specs=[
            pl.BlockSpec((tile_rows, _LANES), lambda i: (i, 0)),
            pl.BlockSpec((tile_rows, _LANES), lambda i: (i, 0)),
        ],
        # Lane-dense per-block partial rows (no resident accumulator, no
        # sub-lane masked scalar stores) -> grid axis is truly parallel.
        out_specs=pl.BlockSpec((1, _LANES), lambda i: (i, 0)),
        compiler_params=pltpu.CompilerParams(
            dimension_semantics=("parallel",),
            vmem_limit_bytes=_VMEM_LIMIT_BYTES,
        ),
        cost_estimate=cost,
    )(lv2, mu2)

    # Tiny (num_blocks, 128) final reduction + (-0.5) scale in plain XLA.
    return -0.5 * jnp.sum(partials)


if __name__ == "__main__":
    key = jax.random.PRNGKey(0)
    k_org, k_rec, k_lv, k_mu, k_lv2, k_mu2 = jax.random.split(key, 6)

    # Small shapes consistent with a VAE forward: NCHW images + (B, latent) stats.
    B, C, H, W = 2, 4, 16, 16
    latent = 32

    org = jax.random.normal(k_org, (B, C, H, W), dtype=jnp.float32)
    rec = jax.random.normal(k_rec, (B, C, H, W), dtype=jnp.float32)
    log_var = 0.1 * jax.random.normal(k_lv, (B, latent), dtype=jnp.float32)
    mean = jax.random.normal(k_mu, (B, latent), dtype=jnp.float32)

    ref_small = -0.5 * jnp.sum(1.0 + log_var - mean**2 - jnp.exp(log_var))

    # 1) Default path: tiny latent -> fused jnp fast path.
    loss_small = kldce_loss(org, rec, log_var, mean)
    jax.block_until_ready(loss_small)
    assert jnp.allclose(loss_small, ref_small, rtol=1e-5, atol=1e-5), (loss_small, ref_small)

    # 2) Force the Pallas kernel on the same tiny stats
    #    (exercises the single full-extent-block path).
    loss_forced = kldce_loss(org, rec, log_var, mean, min_pallas_elems=0)
    jax.block_until_ready(loss_forced)
    assert jnp.allclose(loss_forced, ref_small, rtol=1e-5, atol=1e-5), (loss_forced, ref_small)

    # 3) Moderate stats -> multi-block parallel grid + in-kernel row masking
    #    (rows = 144, tile_rows = 40, 4 blocks, last block masked).
    lv_big = 0.1 * jax.random.normal(k_lv2, (9, 2048), dtype=jnp.float32)
    mu_big = jax.random.normal(k_mu2, (9, 2048), dtype=jnp.float32)
    loss_big = kldce_loss(org, rec, lv_big, mu_big, min_pallas_elems=0)
    ref_big = -0.5 * jnp.sum(1.0 + lv_big - mu_big**2 - jnp.exp(lv_big))
    jax.block_until_ready(loss_big)
    assert jnp.allclose(loss_big, ref_big, rtol=1e-4, atol=1e-3), (loss_big, ref_big)

    # 4) bf16 inputs -> 16-row-aligned blocks, in-kernel f32 cast.
    lv_bf = lv_big.astype(jnp.bfloat16)
    mu_bf = mu_big.astype(jnp.bfloat16)
    loss_bf = kldce_loss(org, rec, lv_bf, mu_bf, min_pallas_elems=0)
    ref_bf = -0.5 * jnp.sum(
        1.0 + lv_bf.astype(jnp.float32) - mu_bf.astype(jnp.float32) ** 2
        - jnp.exp(lv_bf.astype(jnp.float32)))
    jax.block_until_ready(loss_bf)
    assert jnp.allclose(loss_bf, ref_bf, rtol=1e-4, atol=1e-2), (loss_bf, ref_bf)

    print("KERNEL_OK")
</pallas_src>

<mosaic_0001>
module attributes {stable_mosaic.version = 11 : i64} {
  func.func @_kld_partial_kernel(%arg0: i32, %arg1: memref<1x128xf32, #tpu.memory_space<vmem>>, %arg2: memref<1x128xf32, #tpu.memory_space<vmem>>, %arg3: memref<1x128xf32, #tpu.memory_space<vmem>>) attributes {dimension_semantics = [#tpu.dimension_semantics<parallel>], iteration_bounds = array<i64: 1>, scalar_prefetch = 0 : i64, scratch_operands = 0 : i64, tpu.core_type = #tpu.core_type<tc>, window_params = [{transform_indices = @transform_0, window_bounds = array<i64: 1, 128>}, {transform_indices = @transform_1, window_bounds = array<i64: 1, 128>}, {transform_indices = @transform_2, window_bounds = array<i64: 1, 128>}]} {
    %c0 = arith.constant 0 : index
    %c0_0 = arith.constant 0 : index
    %0 = vector.load %arg1[%c0, %c0_0] : memref<1x128xf32, #tpu.memory_space<vmem>>, vector<1x128xf32>
    %c0_1 = arith.constant 0 : index
    %c0_2 = arith.constant 0 : index
    %1 = vector.load %arg2[%c0_1, %c0_2] : memref<1x128xf32, #tpu.memory_space<vmem>>, vector<1x128xf32>
    %cst = arith.constant 1.000000e+00 : f32
    %2 = vector.broadcast %cst : f32 to vector<1x128xf32>
    %3 = arith.addf %2, %0 : vector<1x128xf32>
    %4 = arith.mulf %1, %1 : vector<1x128xf32>
    %5 = arith.subf %3, %4 : vector<1x128xf32>
    %6 = math.exp %0 : vector<1x128xf32>
    %7 = arith.subf %5, %6 : vector<1x128xf32>
    %cst_3 = arith.constant dense<0.000000e+00> : vector<128xf32>
    %8 = vector.multi_reduction <add>, %7, %cst_3 [0] : vector<1x128xf32> to vector<128xf32>
    %9 = vector.shape_cast %8 : vector<128xf32> to vector<1x128xf32>
    %c0_4 = arith.constant 0 : index
    %c0_5 = arith.constant 0 : index
    %10 = vector.load %arg3[%c0_4, %c0_5] : memref<1x128xf32, #tpu.memory_space<vmem>>, vector<1x128xf32>
    tpu.vector_store %arg3[%c0_4, %c0_5], %9 {strides = array<i32>} : memref<1x128xf32, #tpu.memory_space<vmem>>, vector<1x128xf32>,
    return
  }
  func.func @transform_0(%arg0: i32) -> (i32, i32) {
    %c0_i32 = arith.constant 0 : i32
    %c0_i32_0 = arith.constant 0 : i32
    return %arg0, %c0_i32 : i32, i32
  }
  func.func @transform_1(%arg0: i32) -> (i32, i32) {
    %c0_i32 = arith.constant 0 : i32
    %c0_i32_0 = arith.constant 0 : i32
    return %arg0, %c0_i32 : i32, i32
  }
  func.func @transform_2(%arg0: i32) -> (i32, i32) {
    %c0_i32 = arith.constant 0 : i32
    %c0_i32_0 = arith.constant 0 : i32
    return %arg0, %c0_i32 : i32, i32
  }
}

</mosaic_0001>

<llo_original>
// kernel: tpu_custom_call.1
$region0: #{tpu_custom_call.1}
  #allocation0 [shape = 'u32[]', space=smem, size = 0x4, offset = 0x4, fixed_abs, tag = 'smem constant byte address 0x4 - core index']
  #allocation1 [shape = 'u32[144,128]{1,0:T(1,128)}', space=vmem, size = 0x12000, scoped, tag = 'internal scratch']
  %s0 = inlined_call_operand.hbm [shape: f32[1,128], index: 0, kind: input, shape index: {}]
  %s1 = inlined_call_operand.vmem [shape: f32[1,128], index: 1, kind: input, shape index: {}]
  %s2 = inlined_call_operand.hbm [shape: f32[1,128], index: 2, kind: output, shape index: {}]
  %s3 = sld [smem:[#allocation0]]
  $region22: #{tpu_custom_call.1} parent=0
    _
  %s5 = ssub.s32 1, %s3
  %s6 = scalar_select 0, %s5, %s3
  $region1: #{tpu_custom_call.1} parent=0
    #allocation2 [shape = 'u8[512]{0}', space=vmem, size = 0x400, scoped, tag = 'input window, operand 0, single buffered']
    #allocation3 [shape = 's32[1]{0}', space=sflag, size = 0x4, scoped, tag = 'scoped memory for tpu_custom_call.1']
    #allocation4 [shape = 's32[1]{0}', space=sflag, size = 0x4, scoped, tag = 'scoped memory for tpu_custom_call.1']
    #allocation5 [shape = 'u8[512]{0}', space=vmem, size = 0x400, scoped, tag = 'output window, operand 0, single buffered']
    %7 = vsyncpa [#allocation3], 0
    %8 = vsyncpa [#allocation4], 0
    // Predicated region
    $region2: #{tpu_custom_call.1} parent=1 // pred_check
      _
    $region3: #{tpu_custom_call.1} parent=1 // pred_check_branch
      %10 = sbr.rel (0) target = $region5
    $region4: #{tpu_custom_call.1} parent=1 // pred_region
      %s12 = ssub.s32 16, 16
      %13 = vsyncadd [#allocation3], %s12
      %s15 = sshll.u32 [#allocation2], 4
      %s16 = int_to_ptr.vmem [resolvable:$true] %s15
      %18 = dma.hbm_to_vmem [thread:$0]  %s0, 16, %s16, [#allocation3]
    $region5: #{tpu_custom_call.1} parent=1 // pred_fallthru
      _
    // Predicated region
    $region6: #{tpu_custom_call.1} parent=1 // pred_check
      _
    $region7: #{tpu_custom_call.1} parent=1 // pred_check_branch
      %20 = sbr.rel (0) target = $region9
    $region8: #{tpu_custom_call.1} parent=1 // pred_region
      _
    $region9: #{tpu_custom_call.1} parent=1 // pred_fallthru
      _
    // Predicated region
    $region10: #{tpu_custom_call.1} parent=1 // pred_check
      _
    $region11: #{tpu_custom_call.1} parent=1 // pred_check_branch
      %22 = sbr.rel (0) target = $region13
    $region12: #{tpu_custom_call.1} parent=1 // pred_region
      %23 = dma.done [#allocation3], 16
    $region13: #{tpu_custom_call.1} parent=1 // pred_fallthru
      _
    %v24 = vld [vmem:[#allocation2] sm:$0x1]
    %v25 = vld [vmem:[%s1] sm:$0x1]
    %v26 = vadd.f32 %v24, 1.0
    %v27 = vmul.f32 %v25, %v25
    %v28 = vsub.f32 %v26, %v27
    %v29 = vmul.f32 %v24, 1.442695
    %v30 = vpow.pop %v29
    %v31 = vsub.f32 %v28, %v30
    %v32 = vadd.f32 %v31, 0.0
    %33 = vst [vmem:[#allocation5] sm:$0x1] %v32
    // Predicated region
    $region14: #{tpu_custom_call.1} parent=1 // pred_check
      _
    $region15: #{tpu_custom_call.1} parent=1 // pred_check_branch
      %35 = sbr.rel (0) target = $region17
    $region16: #{tpu_custom_call.1} parent=1 // pred_region
      %s37 = ssub.s32 16, 16
      %38 = vsyncadd [#allocation4], %s37
      %s40 = sshll.u32 [#allocation5], 4
      %s41 = int_to_ptr.vmem [resolvable:$true] %s40
      %43 = dma.vmem_to_hbm [thread:$0]  %s41, 16, %s2, [#allocation4]
    $region17: #{tpu_custom_call.1} parent=1 // pred_fallthru
      _
    // Predicated region
    $region18: #{tpu_custom_call.1} parent=1 // pred_check
      _
    $region19: #{tpu_custom_call.1} parent=1 // pred_check_branch
      %45 = sbr.rel (0) target = $region21
    $region20: #{tpu_custom_call.1} parent=1 // pred_region
      %46 = dma.done [#allocation4], 16
    $region21: #{tpu_custom_call.1} parent=1 // pred_fallthru
      _
    %47 = vsyncpa [#allocation3], 1
    %48 = vsyncpa [#allocation4], 1

</llo_original>
